<compile_context>
chip_gen: v5e
topology: v5e:2x2
jax: 0.10.0
libtpu: 0.0.40
codegen_flags: <defaults>
</compile_context>

<pallas_src>
import functools

import jax
import jax.numpy as jnp
from jax.experimental import pallas as pl
from jax.experimental.pallas import tpu as pltpu


def _round_up(v, m):
    return (v + m - 1) // m * m


def _pad2(a, rows, cols):
    return jnp.pad(a, ((0, rows - a.shape[0]), (0, cols - a.shape[1])))


def _vmem_limit_bytes():
    """~75% of physical VMEM (v5e/v6e 128 MiB -> 96 MiB, v7x 64 MiB -> 48 MiB);
    conservative 48 MiB fallback if the hardware query is unavailable."""
    try:
        cap = pltpu.get_tpu_info().vmem_capacity_bytes
    except Exception:  # noqa: BLE001 - any failure -> conservative default
        cap = 64 * 1024 * 1024
    return int(min(cap * 3 // 4, 100 * 1024 * 1024))


def _maxk(x, k, hid):
    """Keep the top-k entries of each row (among the first `hid` lanes), zero
    the rest.  One cross-lane max-reduce per extraction pass, k passes, run
    under lax.fori_loop(unroll=True) so vreg live ranges stay bounded.
    Exact-value ties at the selection boundary keep every tied lane
    (torch.topk keeps the lowest index); indistinguishable for generic floats.
    """
    r, fp = x.shape
    lane_i = jax.lax.broadcasted_iota(jnp.int32, (r, fp), 1)
    if k >= hid:                      # top-k of <= k entries: keep all real lanes
        return jnp.where(lane_i < hid, x, 0.0)
    neg = -jnp.inf
    work0 = jnp.where(lane_i < hid, x, neg)   # padded lanes can never be chosen
    res0 = jnp.zeros_like(x)

    def body(_, carry):
        work, res = carry
        m = jnp.max(work, axis=-1, keepdims=True)     # 1 XLU reduce per pass
        sel = work == m
        res = jnp.where(sel, x, res)
        work = jnp.where(sel, neg, work)
        return work, res

    _, res = jax.lax.fori_loop(0, k, body, (work0, res0), unroll=True)
    return res


def gin_in_kernel(x_ref, w_in_ref, b_in_ref, w_l_ref, b_l_ref,
                  o_ref, obf_ref, *, k_top, hid):
    """One row tile of: h = MaxK(relu(x @ W_in + b_in) @ W_l0 + b_l0).
    Emits the f32 h (next stage's exact self-term) and a bf16 copy (next
    stage's MXU aggregation operand) in one pass."""
    h = jnp.dot(x_ref[...], w_in_ref[...], preferred_element_type=jnp.float32)
    h = jnp.maximum(h + b_in_ref[...], 0.0)
    z = jnp.dot(h, w_l_ref[...], preferred_element_type=jnp.float32)
    z = z + b_l_ref[...]
    # TODO(synk): nn.Dropout(feat_drop) is identity at inference; not applied.
    z = _maxk(z, k_top, hid)
    o_ref[...] = z
    obf_ref[...] = z.astype(jnp.bfloat16)


def gin_layer_kernel(eps_ref, adj_ref, hbf_ref, hself_ref, w_ref, b_ref, *refs,
                     k_top, hid, apply_maxk):
    """GINConv sum-aggregation (K-tiled over source nodes) fused with the next
    dense layer.

    grid = (row tiles, src-node tiles); the src axis is the reduction axis.
    Per (i, k):  acc[i] += adj[i, k] @ h_bf16[k]   (bf16 MXU, f32 accumulation)
    At k == last:
        agg = acc + (1 + eps) * h_f32[i]           (exact f32 self-term)
        out = MaxK(agg @ W + b)    or    agg @ W + b   (final lin_out)
    """
    if apply_maxk:
        o_ref, obf_ref, acc_ref = refs
    else:
        o_ref, acc_ref = refs
    kk = pl.program_id(1)

    @pl.when(kk == 0)
    def _init():
        acc_ref[...] = jnp.zeros_like(acc_ref)

    # bf16 x bf16 -> f32-accumulating MXU matmul; adj entries are exact 0/1.
    acc_ref[...] += jnp.dot(adj_ref[...], hbf_ref[...],
                            preferred_element_type=jnp.float32)

    @pl.when(kk == pl.num_programs(1) - 1)
    def _epilogue():
        agg = acc_ref[...] + eps_ref[0] * hself_ref[...]
        z = jnp.dot(agg, w_ref[...], preferred_element_type=jnp.float32)
        z = z + b_ref[...]
        if apply_maxk:
            z = _maxk(z, k_top, hid)
            obf_ref[...] = z.astype(jnp.bfloat16)
        # self.norm is False by default -> no LayerNorm.
        o_ref[...] = z


def gin_forward(x, adj, w_in, b_in, wl, bl, eps, w_out, b_out, *, maxk,
                tile_r=256, tile_k=512):
    """Full GIN forward (inference).

    tile_r: destination-node (row) tile.  Prefer multiples of 256 on v6e/v7x
            (2x256^2 MXU); 128 is sufficient on v5e.
    tile_k: source-node tile of the K-tiled GINConv aggregation, a multiple of
            128.  512-1024 is a good default -- the aggregation working set is
            O(tile_r * tile_k), independent of the number of nodes.
    """
    n, in_size = x.shape
    num_layers, hid, _ = wl.shape
    out_size = w_out.shape[1]
    assert num_layers >= 1

    f32 = jnp.float32
    bf16 = jnp.bfloat16

    # Lane-dense (128-aligned) feature dims.
    in_p = _round_up(in_size, 128)
    hid_p = _round_up(hid, 128)
    out_p = _round_up(out_size, 128)

    # tile_k: multiple of 128 (lane dim of the adj block), clamped to the graph.
    # tile_r: multiple of 16 (bf16 sublane tile) and a divisor of tile_k.
    tile_k = _round_up(min(tile_k, _round_up(n, 128)), 128)
    tile_r = _round_up(max(16, min(tile_r, tile_k)), 16)
    while tile_k % tile_r:
        tile_r -= 16
    n_p = _round_up(n, tile_k)
    grid_r = n_p // tile_r
    grid_k = n_p // tile_k

    xp = _pad2(x.astype(f32), n_p, in_p)
    # Cast to bf16 BEFORE padding: no padded f32 N^2 temp in HBM.
    adj_bf = _pad2(adj.astype(bf16), n_p, n_p)
    w_in_p = _pad2(w_in.astype(f32), in_p, hid_p)
    b_in_p = _pad2(b_in.astype(f32), 1, hid_p)
    wl_p = jnp.pad(wl.astype(f32), ((0, 0), (0, hid_p - hid), (0, hid_p - hid)))
    bl_p = jnp.pad(bl.astype(f32), ((0, 0), (0, 0), (0, hid_p - hid)))
    w_out_p = _pad2(w_out.astype(f32), hid_p, out_p)
    b_out_p = _pad2(b_out.astype(f32), 1, out_p)
    one_plus_eps = (1.0 + eps.astype(f32))                 # [L], precomputed

    vmem_limit = _vmem_limit_bytes()
    cp_rows = pltpu.CompilerParams(
        dimension_semantics=("parallel",), vmem_limit_bytes=vmem_limit)
    cp_layer = pltpu.CompilerParams(
        dimension_semantics=("parallel", "arbitrary"),
        vmem_limit_bytes=vmem_limit)
    smem_spec = pl.BlockSpec(memory_space=pltpu.MemorySpace.SMEM)

    # ---- stage 0: lin_in + relu + linlayers[0] + MaxK (row-local) ----------
    h, h_bf = pl.pallas_call(
        functools.partial(gin_in_kernel, k_top=maxk, hid=hid),
        grid=(grid_r,),
        in_specs=[pl.BlockSpec((tile_r, in_p), lambda i: (i, 0)),
                  pl.BlockSpec((in_p, hid_p), lambda i: (0, 0)),
                  pl.BlockSpec((1, hid_p), lambda i: (0, 0)),
                  pl.BlockSpec((hid_p, hid_p), lambda i: (0, 0)),
                  pl.BlockSpec((1, hid_p), lambda i: (0, 0))],
        out_specs=[pl.BlockSpec((tile_r, hid_p), lambda i: (i, 0)),
                   pl.BlockSpec((tile_r, hid_p), lambda i: (i, 0))],
        out_shape=[jax.ShapeDtypeStruct((n_p, hid_p), f32),
                   jax.ShapeDtypeStruct((n_p, hid_p), bf16)],
        compiler_params=cp_rows,
        cost_estimate=pl.CostEstimate(
            flops=2 * n_p * (in_p + hid_p) * hid_p,
            transcendentals=0,
            bytes_accessed=4 * (n_p * in_p + in_p * hid_p + hid_p * hid_p
                                + n_p * hid_p) + 2 * n_p * hid_p),
    )(xp, w_in_p, b_in_p, wl_p[0], bl_p[0])

    # ---- stages 1..L: K-tiled GINConv aggregation + next dense layer -------
    out = None
    for j in range(1, num_layers + 1):
        last = j == num_layers
        w = w_out_p if last else wl_p[j]
        b = b_out_p if last else bl_p[j]
        cols = out_p if last else hid_p

        in_specs = [
            smem_spec,                                            # 1 + eps
            pl.BlockSpec((tile_r, tile_k), lambda i, k: (i, k)),  # adj tile (bf16)
            pl.BlockSpec((tile_k, hid_p), lambda i, k: (k, 0)),   # h stream (bf16)
            pl.BlockSpec((tile_r, hid_p), lambda i, k: (i, 0)),   # h self-term (f32)
            pl.BlockSpec((hid_p, cols), lambda i, k: (0, 0)),     # weight
            pl.BlockSpec((1, cols), lambda i, k: (0, 0)),         # bias
        ]
        if last:
            out_specs = pl.BlockSpec((tile_r, cols), lambda i, k: (i, 0))
            out_shape = jax.ShapeDtypeStruct((n_p, cols), f32)
        else:
            out_specs = [pl.BlockSpec((tile_r, cols), lambda i, k: (i, 0)),
                         pl.BlockSpec((tile_r, hid_p), lambda i, k: (i, 0))]
            out_shape = [jax.ShapeDtypeStruct((n_p, cols), f32),
                         jax.ShapeDtypeStruct((n_p, hid_p), bf16)]

        res = pl.pallas_call(
            functools.partial(gin_layer_kernel, k_top=maxk, hid=hid,
                              apply_maxk=not last),
            grid=(grid_r, grid_k),
            in_specs=in_specs,
            out_specs=out_specs,
            out_shape=out_shape,
            scratch_shapes=[pltpu.VMEM((tile_r, hid_p), f32)],
            compiler_params=cp_layer,
            cost_estimate=pl.CostEstimate(
                flops=2 * n_p * n_p * hid_p + 2 * n_p * hid_p * cols,
                transcendentals=0,
                bytes_accessed=(2 * n_p * n_p                      # adj, bf16
                                + 2 * grid_r * n_p * hid_p         # h_bf restream
                                + 4 * (n_p * hid_p + hid_p * cols
                                       + n_p * cols))),
        )(one_plus_eps[j - 1:j], adj_bf, h_bf, h, w, b)

        if last:
            out = res
        else:
            h, h_bf = res

    # Slice the lane-dense padded slab back to the real output shape.
    return out[:n, :out_size]


def gin_reference(x, adj, w_in, b_in, wl, bl, eps, w_out, b_out, maxk):
    """Pure-JAX reference mirroring the kernel's precision choices: f32
    everywhere except the GINConv neighbour matmul, which (like the kernel's
    MXU aggregation) uses bf16 operands with f32 accumulation."""
    bf16 = jnp.bfloat16
    h = jnp.maximum(x @ w_in + b_in, 0.0)
    for i in range(wl.shape[0]):
        h = h @ wl[i] + bl[i]
        if maxk < h.shape[1]:
            _, idx = jax.lax.top_k(h, maxk)
            mask = jnp.zeros_like(h).at[
                jnp.arange(h.shape[0])[:, None], idx].set(1.0)
            h = h * mask
        neigh = jnp.dot(adj.astype(bf16), h.astype(bf16),
                        preferred_element_type=jnp.float32)
        h = (1.0 + eps[i]) * h + neigh
    return h @ w_out + b_out


def maxk_only_kernel(x_ref, o_ref, *, k_top, hid):
    o_ref[...] = _maxk(x_ref[...], k_top, hid)


if __name__ == "__main__":
    N, IN, HID, OUT, L, MAXK = 160, 16, 64, 8, 2, 8

    key = jax.random.PRNGKey(0)
    keys = jax.random.split(key, 12)

    # Node features + synthetic random graph (dense adjacency, no self-loops).
    x = jax.random.normal(keys[0], (N, IN), jnp.float32)
    adj = (jax.random.uniform(keys[1], (N, N)) < 0.1).astype(jnp.float32)
    adj = adj * (1.0 - jnp.eye(N, dtype=jnp.float32))

    # Parameter init (shapes from GIN.__init__): xavier_uniform weights,
    # PyTorch-Linear-default uniform biases.
    def xavier(k_, fan_in, fan_out):
        bound = (6.0 / (fan_in + fan_out)) ** 0.5
        return jax.random.uniform(k_, (fan_in, fan_out), jnp.float32, -bound, bound)

    def bias_init(k_, fan_in, size):
        bound = 1.0 / (fan_in ** 0.5)
        return jax.random.uniform(k_, (1, size), jnp.float32, -bound, bound)

    w_in = xavier(keys[2], IN, HID)
    b_in = bias_init(keys[3], IN, HID)
    wl = jnp.stack([xavier(keys[4 + i], HID, HID) for i in range(L)])      # [L,H,H]
    bl = jnp.stack([bias_init(keys[6 + i], HID, HID) for i in range(L)])   # [L,1,H]
    w_out = xavier(keys[8], HID, OUT)
    b_out = bias_init(keys[9], HID, OUT)
    eps = jnp.array([0.25, -0.5], jnp.float32)   # GINConv learn_eps parameters

    # Small tiles so the demo exercises a multi-step (row x src) grid:
    # n_p = 256 -> grid = (4, 2).  Use the 256/512 defaults at real graph sizes.
    fwd = functools.partial(gin_forward, tile_r=64, tile_k=128)

    # --- check 1: MaxK selection vs lax.top_k on tie-free, exactly-represent-
    # able data (selection is bitwise insensitive to matmul rounding here) ----
    R, FP, HID_T, K_T = 64, 128, 96, 7
    perm = jax.random.permutation(keys[10], R * HID_T).reshape(R, HID_T)
    xm = jnp.zeros((R, FP), jnp.float32).at[:, :HID_T].set(
        (perm.astype(jnp.float32) - R * HID_T / 2) * 0.5)
    got = pl.pallas_call(
        functools.partial(maxk_only_kernel, k_top=K_T, hid=HID_T),
        out_shape=jax.ShapeDtypeStruct((R, FP), jnp.float32))(xm)
    got = jax.block_until_ready(got)
    _, idx = jax.lax.top_k(xm[:, :HID_T], K_T)
    mask = jnp.zeros((R, HID_T), jnp.float32).at[
        jnp.arange(R)[:, None], idx].set(1.0)
    want = jnp.zeros((R, FP), jnp.float32).at[:, :HID_T].set(
        xm[:, :HID_T] * mask)
    assert jnp.array_equal(got, want), "MaxK kernel mismatch vs lax.top_k"

    # --- check 2: end-to-end forward with maxk == hid (MaxK == identity, so
    # the comparison is free of top-k boundary-flip sensitivity) -------------
    out_full = fwd(x, adj, w_in, b_in, wl, bl, eps, w_out, b_out, maxk=HID)
    out_full = jax.block_until_ready(out_full)
    ref_full = gin_reference(x, adj, w_in, b_in, wl, bl, eps, w_out, b_out, HID)
    assert out_full.shape == (N, OUT)
    assert jnp.allclose(out_full, ref_full, rtol=2e-2, atol=5e-2), \
        "GIN forward (maxk == hid) mismatch vs pure-JAX reference"

    # --- check 3: full iterative-MaxK path end-to-end (top-k selections are
    # legitimately sensitive to matmul rounding across implementations, so
    # only sanity-check shape / finiteness here; numerics covered above) -----
    out = fwd(x, adj, w_in, b_in, wl, bl, eps, w_out, b_out, maxk=MAXK)
    out = jax.block_until_ready(out)
    assert out.shape == (N, OUT)
    assert bool(jnp.all(jnp.isfinite(out)))

    print("KERNEL_OK")
</pallas_src>

<mosaic_0001>
module attributes {stable_mosaic.version = 11 : i64} {
  func.func @maxk_only_kernel(%arg0: memref<64x128xf32, #tpu.memory_space<vmem>>, %arg1: memref<64x128xf32, #tpu.memory_space<vmem>>) attributes {dimension_semantics = [], scalar_prefetch = 0 : i64, scratch_operands = 0 : i64, tpu.core_type = #tpu.core_type<tc>} {
    %c0 = arith.constant 0 : index
    %c0_0 = arith.constant 0 : index
    %0 = vector.load %arg0[%c0, %c0_0] : memref<64x128xf32, #tpu.memory_space<vmem>>, vector<64x128xf32>
    %1 = tpu.iota {dimensions = array<i32: 1>} : vector<64x128xi32>
    %c96_i32 = arith.constant 96 : i32
    %2 = vector.broadcast %c96_i32 : i32 to vector<64x128xi32>
    %3 = arith.cmpi slt, %1, %2 : vector<64x128xi32>
    %cst = arith.constant 0xFF800000 : f32
    %4 = vector.broadcast %cst : f32 to vector<64x128xf32>
    %5 = arith.select %3, %0, %4 : vector<64x128xi1>, vector<64x128xf32>
    %cst_1 = arith.constant 0.000000e+00 : f32
    %6 = vector.broadcast %cst_1 : f32 to vector<64x128xf32>
    %c0_i32 = arith.constant 0 : i32
    %cst_2 = arith.constant dense<0xFF800000> : vector<64xf32>
    %7 = vector.multi_reduction <maximumf>, %5, %cst_2 [1] : vector<64x128xf32> to vector<64xf32>
    %8 = vector.shape_cast %7 : vector<64xf32> to vector<64x1xf32>
    %9 = vector.broadcast %8 : vector<64x1xf32> to vector<64x128xf32>
    %10 = arith.cmpf oeq, %5, %9 : vector<64x128xf32>
    %11 = arith.select %10, %0, %6 : vector<64x128xi1>, vector<64x128xf32>
    %cst_3 = arith.constant 0xFF800000 : f32
    %12 = vector.broadcast %cst_3 : f32 to vector<64x128xf32>
    %13 = arith.select %10, %12, %5 : vector<64x128xi1>, vector<64x128xf32>
    %c1_i32 = arith.constant 1 : i32
    %cst_4 = arith.constant dense<0xFF800000> : vector<64xf32>
    %14 = vector.multi_reduction <maximumf>, %13, %cst_4 [1] : vector<64x128xf32> to vector<64xf32>
    %15 = vector.shape_cast %14 : vector<64xf32> to vector<64x1xf32>
    %16 = vector.broadcast %15 : vector<64x1xf32> to vector<64x128xf32>
    %17 = arith.cmpf oeq, %13, %16 : vector<64x128xf32>
    %18 = arith.select %17, %0, %11 : vector<64x128xi1>, vector<64x128xf32>
    %cst_5 = arith.constant 0xFF800000 : f32
    %19 = vector.broadcast %cst_5 : f32 to vector<64x128xf32>
    %20 = arith.select %17, %19, %13 : vector<64x128xi1>, vector<64x128xf32>
    %c2_i32 = arith.constant 2 : i32
    %cst_6 = arith.constant dense<0xFF800000> : vector<64xf32>
    %21 = vector.multi_reduction <maximumf>, %20, %cst_6 [1] : vector<64x128xf32> to vector<64xf32>
    %22 = vector.shape_cast %21 : vector<64xf32> to vector<64x1xf32>
    %23 = vector.broadcast %22 : vector<64x1xf32> to vector<64x128xf32>
    %24 = arith.cmpf oeq, %20, %23 : vector<64x128xf32>
    %25 = arith.select %24, %0, %18 : vector<64x128xi1>, vector<64x128xf32>
    %cst_7 = arith.constant 0xFF800000 : f32
    %26 = vector.broadcast %cst_7 : f32 to vector<64x128xf32>
    %27 = arith.select %24, %26, %20 : vector<64x128xi1>, vector<64x128xf32>
    %c3_i32 = arith.constant 3 : i32
    %cst_8 = arith.constant dense<0xFF800000> : vector<64xf32>
    %28 = vector.multi_reduction <maximumf>, %27, %cst_8 [1] : vector<64x128xf32> to vector<64xf32>
    %29 = vector.shape_cast %28 : vector<64xf32> to vector<64x1xf32>
    %30 = vector.broadcast %29 : vector<64x1xf32> to vector<64x128xf32>
    %31 = arith.cmpf oeq, %27, %30 : vector<64x128xf32>
    %32 = arith.select %31, %0, %25 : vector<64x128xi1>, vector<64x128xf32>
    %cst_9 = arith.constant 0xFF800000 : f32
    %33 = vector.broadcast %cst_9 : f32 to vector<64x128xf32>
    %34 = arith.select %31, %33, %27 : vector<64x128xi1>, vector<64x128xf32>
    %c4_i32 = arith.constant 4 : i32
    %cst_10 = arith.constant dense<0xFF800000> : vector<64xf32>
    %35 = vector.multi_reduction <maximumf>, %34, %cst_10 [1] : vector<64x128xf32> to vector<64xf32>
    %36 = vector.shape_cast %35 : vector<64xf32> to vector<64x1xf32>
    %37 = vector.broadcast %36 : vector<64x1xf32> to vector<64x128xf32>
    %38 = arith.cmpf oeq, %34, %37 : vector<64x128xf32>
    %39 = arith.select %38, %0, %32 : vector<64x128xi1>, vector<64x128xf32>
    %cst_11 = arith.constant 0xFF800000 : f32
    %40 = vector.broadcast %cst_11 : f32 to vector<64x128xf32>
    %41 = arith.select %38, %40, %34 : vector<64x128xi1>, vector<64x128xf32>
    %c5_i32 = arith.constant 5 : i32
    %cst_12 = arith.constant dense<0xFF800000> : vector<64xf32>
    %42 = vector.multi_reduction <maximumf>, %41, %cst_12 [1] : vector<64x128xf32> to vector<64xf32>
    %43 = vector.shape_cast %42 : vector<64xf32> to vector<64x1xf32>
    %44 = vector.broadcast %43 : vector<64x1xf32> to vector<64x128xf32>
    %45 = arith.cmpf oeq, %41, %44 : vector<64x128xf32>
    %46 = arith.select %45, %0, %39 : vector<64x128xi1>, vector<64x128xf32>
    %cst_13 = arith.constant 0xFF800000 : f32
    %47 = vector.broadcast %cst_13 : f32 to vector<64x128xf32>
    %48 = arith.select %45, %47, %41 : vector<64x128xi1>, vector<64x128xf32>
    %c6_i32 = arith.constant 6 : i32
    %cst_14 = arith.constant dense<0xFF800000> : vector<64xf32>
    %49 = vector.multi_reduction <maximumf>, %48, %cst_14 [1] : vector<64x128xf32> to vector<64xf32>
    %50 = vector.shape_cast %49 : vector<64xf32> to vector<64x1xf32>
    %51 = vector.broadcast %50 : vector<64x1xf32> to vector<64x128xf32>
    %52 = arith.cmpf oeq, %48, %51 : vector<64x128xf32>
    %53 = arith.select %52, %0, %46 : vector<64x128xi1>, vector<64x128xf32>
    %cst_15 = arith.constant 0xFF800000 : f32
    %54 = vector.broadcast %cst_15 : f32 to vector<64x128xf32>
    %55 = arith.select %52, %54, %48 : vector<64x128xi1>, vector<64x128xf32>
    %c0_16 = arith.constant 0 : index
    %c0_17 = arith.constant 0 : index
    %56 = vector.load %arg1[%c0_16, %c0_17] : memref<64x128xf32, #tpu.memory_space<vmem>>, vector<64x128xf32>
    tpu.vector_store %arg1[%c0_16, %c0_17], %53 {strides = array<i32>} : memref<64x128xf32, #tpu.memory_space<vmem>>, vector<64x128xf32>,
    return
  }
}

</mosaic_0001>

<llo_original>
// kernel: tpu_custom_call.1
$region0: #{tpu_custom_call.1}
  #allocation0 [shape = 'u32[]', space=smem, size = 0x4, offset = 0x4, fixed_abs, tag = 'smem constant byte address 0x4 - core index']
  #allocation1 [shape = 'u32[72,128]{1,0:T(1,128)}', space=vmem, size = 0x9000, scoped, tag = 'internal scratch']
  %s0 = inlined_call_operand.hbm [shape: f32[64,128], index: 0, kind: input, shape index: {}]
  %s1 = inlined_call_operand.hbm [shape: f32[64,128], index: 1, kind: output, shape index: {}]
  %s2 = sld [smem:[#allocation0]]
  $region18: #{tpu_custom_call.1} parent=0
    _
  %s4 = ssub.s32 1, %s2
  %s5 = scalar_select 0, %s4, %s2
  $region1: #{tpu_custom_call.1} parent=0
    #allocation2 [shape = 'u8[32768]{0}', space=vmem, size = 0x8000, scoped, tag = 'input window, operand 0, single buffered']
    #allocation3 [shape = 's32[1]{0}', space=sflag, size = 0x4, scoped, tag = 'scoped memory for tpu_custom_call.1']
    #allocation4 [shape = 's32[1]{0}', space=sflag, size = 0x4, scoped, tag = 'scoped memory for tpu_custom_call.1']
    #allocation5 [shape = 'u8[32768]{0}', space=vmem, size = 0x8000, scoped, tag = 'output window, operand 0, single buffered']
    %6 = vsyncpa [#allocation3], 0
    %7 = vsyncpa [#allocation4], 0
    // Predicated region
    $region2: #{tpu_custom_call.1} parent=1 // pred_check
      _
    $region3: #{tpu_custom_call.1} parent=1 // pred_check_branch
      %9 = sbr.rel (0) target = $region5
    $region4: #{tpu_custom_call.1} parent=1 // pred_region
      %11 = vsyncadd [#allocation3], 0
      %s12 = sshll.u32 %s0, 4
      %s13 = int_to_ptr.hbm [resolvable:$true] %s12
      %s14 = sshll.u32 [#allocation2], 4
      %s15 = int_to_ptr.vmem [resolvable:$true] %s14
      %20 = dma.hbm_to_vmem [thread:$0]  %s13, 1024, %s15, [#allocation3], 128, 128, 8
    $region5: #{tpu_custom_call.1} parent=1 // pred_fallthru
      _
    // Predicated region
    $region6: #{tpu_custom_call.1} parent=1 // pred_check
      _
    $region7: #{tpu_custom_call.1} parent=1 // pred_check_branch
      %22 = sbr.rel (0) target = $region9
    $region8: #{tpu_custom_call.1} parent=1 // pred_region
      %24 = dma.done [#allocation3], 1024
    $region9: #{tpu_custom_call.1} parent=1 // pred_fallthru
      _
    %v25 = vld [vmem:[#allocation2] sm:$0xff]
    %v26 = vld [vmem:[#allocation2 + $0x8] sm:$0xff]
    %v27 = vld [vmem:[#allocation2 + $0x10] sm:$0xff]
    %v28 = vld [vmem:[#allocation2 + $0x18] sm:$0xff]
    %v29 = vld [vmem:[#allocation2 + $0x20] sm:$0xff]
    %v30 = vld [vmem:[#allocation2 + $0x28] sm:$0xff]
    %v31 = vld [vmem:[#allocation2 + $0x30] sm:$0xff]
    %v32 = vld [vmem:[#allocation2 + $0x38] sm:$0xff]
    %v33 = vlaneseq
    %v34 = vand.u32 %v33, 127
    %vm35 = vcmp.lt.s32.totalorder %v34, 96
    %v36 = vsel %vm35, %v25, -inf
    %v37 = vsel %vm35, %v26, -inf
    %v38 = vsel %vm35, %v27, -inf
    %v39 = vsel %vm35, %v28, -inf
    %v40 = vsel %vm35, %v29, -inf
    %v41 = vsel %vm35, %v30, -inf
    %v42 = vsel %vm35, %v31, -inf
    %v43 = vsel %vm35, %v32, -inf
    %44 = vmax.xlane.f32.xlu0 %v36
    %v45 = vpop.xlane.xlu0 %44
    %46 = vmax.xlane.f32.xlu0 %v37
    %v47 = vpop.xlane.xlu0 %46
    %48 = vmax.xlane.f32.xlu0 %v38
    %v49 = vpop.xlane.xlu0 %48
    %50 = vmax.xlane.f32.xlu0 %v39
    %v51 = vpop.xlane.xlu0 %50
    %52 = vmax.xlane.f32.xlu0 %v40
    %v53 = vpop.xlane.xlu0 %52
    %54 = vmax.xlane.f32.xlu0 %v41
    %v55 = vpop.xlane.xlu0 %54
    %56 = vmax.xlane.f32.xlu0 %v42
    %v57 = vpop.xlane.xlu0 %56
    %58 = vmax.xlane.f32.xlu0 %v43
    %v59 = vpop.xlane.xlu0 %58
    %vm60 = vcmp.eq.f32.partialorder %v36, %v45
    %vm61 = vcmp.eq.f32.partialorder %v37, %v47
    %vm62 = vcmp.eq.f32.partialorder %v38, %v49
    %vm63 = vcmp.eq.f32.partialorder %v39, %v51
    %vm64 = vcmp.eq.f32.partialorder %v40, %v53
    %vm65 = vcmp.eq.f32.partialorder %v41, %v55
    %vm66 = vcmp.eq.f32.partialorder %v42, %v57
    %vm67 = vcmp.eq.f32.partialorder %v43, %v59
    %v68 = vsel %vm60, %v25, 0.0
    %v69 = vsel %vm61, %v26, 0.0
    %v70 = vsel %vm62, %v27, 0.0
    %v71 = vsel %vm63, %v28, 0.0
    %v72 = vsel %vm64, %v29, 0.0
    %v73 = vsel %vm65, %v30, 0.0
    %v74 = vsel %vm66, %v31, 0.0
    %v75 = vsel %vm67, %v32, 0.0
    %v76 = vsel %vm60, -inf, %v36
    %v77 = vsel %vm61, -inf, %v37
    %v78 = vsel %vm62, -inf, %v38
    %v79 = vsel %vm63, -inf, %v39
    %v80 = vsel %vm64, -inf, %v40
    %v81 = vsel %vm65, -inf, %v41
    %v82 = vsel %vm66, -inf, %v42
    %v83 = vsel %vm67, -inf, %v43
    %84 = vmax.xlane.f32.xlu0 %v76
    %v85 = vpop.xlane.xlu0 %84
    %86 = vmax.xlane.f32.xlu0 %v77
    %v87 = vpop.xlane.xlu0 %86
    %88 = vmax.xlane.f32.xlu0 %v78
    %v89 = vpop.xlane.xlu0 %88
    %90 = vmax.xlane.f32.xlu0 %v79
    %v91 = vpop.xlane.xlu0 %90
    %92 = vmax.xlane.f32.xlu0 %v80
    %v93 = vpop.xlane.xlu0 %92
    %94 = vmax.xlane.f32.xlu0 %v81
    %v95 = vpop.xlane.xlu0 %94
    %96 = vmax.xlane.f32.xlu0 %v82
    %v97 = vpop.xlane.xlu0 %96
    %98 = vmax.xlane.f32.xlu0 %v83
    %v99 = vpop.xlane.xlu0 %98
    %vm100 = vcmp.eq.f32.partialorder %v76, %v85
    %vm101 = vcmp.eq.f32.partialorder %v77, %v87
    %vm102 = vcmp.eq.f32.partialorder %v78, %v89
    %vm103 = vcmp.eq.f32.partialorder %v79, %v91
    %vm104 = vcmp.eq.f32.partialorder %v80, %v93
    %vm105 = vcmp.eq.f32.partialorder %v81, %v95
    %vm106 = vcmp.eq.f32.partialorder %v82, %v97
    %vm107 = vcmp.eq.f32.partialorder %v83, %v99
    %v108 = vsel %vm100, %v25, %v68
    %v109 = vsel %vm101, %v26, %v69
    %v110 = vsel %vm102, %v27, %v70
    %v111 = vsel %vm103, %v28, %v71
    %v112 = vsel %vm104, %v29, %v72
    %v113 = vsel %vm105, %v30, %v73
    %v114 = vsel %vm106, %v31, %v74
    %v115 = vsel %vm107, %v32, %v75
    %v116 = vsel %vm100, -inf, %v76
    %v117 = vsel %vm101, -inf, %v77
    %v118 = vsel %vm102, -inf, %v78
    %v119 = vsel %vm103, -inf, %v79
    %v120 = vsel %vm104, -inf, %v80
    %v121 = vsel %vm105, -inf, %v81
    %v122 = vsel %vm106, -inf, %v82
    %v123 = vsel %vm107, -inf, %v83
    %124 = vmax.xlane.f32.xlu0 %v116
    %v125 = vpop.xlane.xlu0 %124
    %126 = vmax.xlane.f32.xlu0 %v117
    %v127 = vpop.xlane.xlu0 %126
    %128 = vmax.xlane.f32.xlu0 %v118
    %v129 = vpop.xlane.xlu0 %128
    %130 = vmax.xlane.f32.xlu0 %v119
    %v131 = vpop.xlane.xlu0 %130
    %132 = vmax.xlane.f32.xlu0 %v120
    %v133 = vpop.xlane.xlu0 %132
    %134 = vmax.xlane.f32.xlu0 %v121
    %v135 = vpop.xlane.xlu0 %134
    %136 = vmax.xlane.f32.xlu0 %v122
    %v137 = vpop.xlane.xlu0 %136
    %138 = vmax.xlane.f32.xlu0 %v123
    %v139 = vpop.xlane.xlu0 %138
    %vm140 = vcmp.eq.f32.partialorder %v116, %v125
    %vm141 = vcmp.eq.f32.partialorder %v117, %v127
    %vm142 = vcmp.eq.f32.partialorder %v118, %v129
    %vm143 = vcmp.eq.f32.partialorder %v119, %v131
    %vm144 = vcmp.eq.f32.partialorder %v120, %v133
    %vm145 = vcmp.eq.f32.partialorder %v121, %v135
    %vm146 = vcmp.eq.f32.partialorder %v122, %v137
    %vm147 = vcmp.eq.f32.partialorder %v123, %v139
    %v148 = vsel %vm140, %v25, %v108
    %v149 = vsel %vm141, %v26, %v109
    %v150 = vsel %vm142, %v27, %v110
    %v151 = vsel %vm143, %v28, %v111
    %v152 = vsel %vm144, %v29, %v112
    %v153 = vsel %vm145, %v30, %v113
    %v154 = vsel %vm146, %v31, %v114
    %v155 = vsel %vm147, %v32, %v115
    %v156 = vsel %vm140, -inf, %v116
    %v157 = vsel %vm141, -inf, %v117
    %v158 = vsel %vm142, -inf, %v118
    %v159 = vsel %vm143, -inf, %v119
    %v160 = vsel %vm144, -inf, %v120
    %v161 = vsel %vm145, -inf, %v121
    %v162 = vsel %vm146, -inf, %v122
    %v163 = vsel %vm147, -inf, %v123
    %164 = vmax.xlane.f32.xlu0 %v156
    %v165 = vpop.xlane.xlu0 %164
    %166 = vmax.xlane.f32.xlu0 %v157
    %v167 = vpop.xlane.xlu0 %166
    %168 = vmax.xlane.f32.xlu0 %v158
    %v169 = vpop.xlane.xlu0 %168
    %170 = vmax.xlane.f32.xlu0 %v159
    %v171 = vpop.xlane.xlu0 %170
    %172 = vmax.xlane.f32.xlu0 %v160
    %v173 = vpop.xlane.xlu0 %172
    %174 = vmax.xlane.f32.xlu0 %v161
    %v175 = vpop.xlane.xlu0 %174
    %176 = vmax.xlane.f32.xlu0 %v162
    %v177 = vpop.xlane.xlu0 %176
    %178 = vmax.xlane.f32.xlu0 %v163
    %v179 = vpop.xlane.xlu0 %178
    %vm180 = vcmp.eq.f32.partialorder %v156, %v165
    %vm181 = vcmp.eq.f32.partialorder %v157, %v167
    %vm182 = vcmp.eq.f32.partialorder %v158, %v169
    %vm183 = vcmp.eq.f32.partialorder %v159, %v171
    %vm184 = vcmp.eq.f32.partialorder %v160, %v173
    %vm185 = vcmp.eq.f32.partialorder %v161, %v175
    %vm186 = vcmp.eq.f32.partialorder %v162, %v177
    %vm187 = vcmp.eq.f32.partialorder %v163, %v179
    %v188 = vsel %vm180, %v25, %v148
    %v189 = vsel %vm181, %v26, %v149
    %v190 = vsel %vm182, %v27, %v150
    %v191 = vsel %vm183, %v28, %v151
    %v192 = vsel %vm184, %v29, %v152
    %v193 = vsel %vm185, %v30, %v153
    %v194 = vsel %vm186, %v31, %v154
    %v195 = vsel %vm187, %v32, %v155
    %v196 = vsel %vm180, -inf, %v156
    %v197 = vsel %vm181, -inf, %v157
    %v198 = vsel %vm182, -inf, %v158
    %v199 = vsel %vm183, -inf, %v159
    %v200 = vsel %vm184, -inf, %v160
    %v201 = vsel %vm185, -inf, %v161
    %v202 = vsel %vm186, -inf, %v162
    %v203 = vsel %vm187, -inf, %v163
    %204 = vmax.xlane.f32.xlu0 %v196
    %v205 = vpop.xlane.xlu0 %204
    %206 = vmax.xlane.f32.xlu0 %v197
    %v207 = vpop.xlane.xlu0 %206
    %208 = vmax.xlane.f32.xlu0 %v198
    %v209 = vpop.xlane.xlu0 %208
    %210 = vmax.xlane.f32.xlu0 %v199
    %v211 = vpop.xlane.xlu0 %210
    %212 = vmax.xlane.f32.xlu0 %v200
    %v213 = vpop.xlane.xlu0 %212
    %214 = vmax.xlane.f32.xlu0 %v201
    %v215 = vpop.xlane.xlu0 %214
    %216 = vmax.xlane.f32.xlu0 %v202
    %v217 = vpop.xlane.xlu0 %216
    %218 = vmax.xlane.f32.xlu0 %v203
    %v219 = vpop.xlane.xlu0 %218
    %vm220 = vcmp.eq.f32.partialorder %v196, %v205
    %vm221 = vcmp.eq.f32.partialorder %v197, %v207
    %vm222 = vcmp.eq.f32.partialorder %v198, %v209
    %vm223 = vcmp.eq.f32.partialorder %v199, %v211
    %vm224 = vcmp.eq.f32.partialorder %v200, %v213
    %vm225 = vcmp.eq.f32.partialorder %v201, %v215
    %vm226 = vcmp.eq.f32.partialorder %v202, %v217
    %vm227 = vcmp.eq.f32.partialorder %v203, %v219
    %v228 = vsel %vm220, %v25, %v188
    %v229 = vsel %vm221, %v26, %v189
    %v230 = vsel %vm222, %v27, %v190
    %v231 = vsel %vm223, %v28, %v191
    %v232 = vsel %vm224, %v29, %v192
    %v233 = vsel %vm225, %v30, %v193
    %v234 = vsel %vm226, %v31, %v194
    %v235 = vsel %vm227, %v32, %v195
    %v236 = vsel %vm220, -inf, %v196
    %v237 = vsel %vm221, -inf, %v197
    %v238 = vsel %vm222, -inf, %v198
    %v239 = vsel %vm223, -inf, %v199
    %v240 = vsel %vm224, -inf, %v200
    %v241 = vsel %vm225, -inf, %v201
    %v242 = vsel %vm226, -inf, %v202
    %v243 = vsel %vm227, -inf, %v203
    %244 = vmax.xlane.f32.xlu0 %v236
    %v245 = vpop.xlane.xlu0 %244
    %246 = vmax.xlane.f32.xlu0 %v237
    %v247 = vpop.xlane.xlu0 %246
    %248 = vmax.xlane.f32.xlu0 %v238
    %v249 = vpop.xlane.xlu0 %248
    %250 = vmax.xlane.f32.xlu0 %v239
    %v251 = vpop.xlane.xlu0 %250
    %252 = vmax.xlane.f32.xlu0 %v240
    %v253 = vpop.xlane.xlu0 %252
    %254 = vmax.xlane.f32.xlu0 %v241
    %v255 = vpop.xlane.xlu0 %254
    %256 = vmax.xlane.f32.xlu0 %v242
    %v257 = vpop.xlane.xlu0 %256
    %258 = vmax.xlane.f32.xlu0 %v243
    %v259 = vpop.xlane.xlu0 %258
    %vm260 = vcmp.eq.f32.partialorder %v236, %v245
    %vm261 = vcmp.eq.f32.partialorder %v237, %v247
    %vm262 = vcmp.eq.f32.partialorder %v238, %v249
    %vm263 = vcmp.eq.f32.partialorder %v239, %v251
    %vm264 = vcmp.eq.f32.partialorder %v240, %v253
    %vm265 = vcmp.eq.f32.partialorder %v241, %v255
    %vm266 = vcmp.eq.f32.partialorder %v242, %v257
    %vm267 = vcmp.eq.f32.partialorder %v243, %v259
    %v268 = vsel %vm260, %v25, %v228
    %v269 = vsel %vm261, %v26, %v229
    %v270 = vsel %vm262, %v27, %v230
    %v271 = vsel %vm263, %v28, %v231
    %v272 = vsel %vm264, %v29, %v232
    %v273 = vsel %vm265, %v30, %v233
    %v274 = vsel %vm266, %v31, %v234
    %v275 = vsel %vm267, %v32, %v235
    %v276 = vsel %vm260, -inf, %v236
    %v277 = vsel %vm261, -inf, %v237
    %v278 = vsel %vm262, -inf, %v238
    %v279 = vsel %vm263, -inf, %v239
    %v280 = vsel %vm264, -inf, %v240
    %v281 = vsel %vm265, -inf, %v241
    %v282 = vsel %vm266, -inf, %v242
    %v283 = vsel %vm267, -inf, %v243
    %284 = vmax.xlane.f32.xlu0 %v276
    %v285 = vpop.xlane.xlu0 %284
    %286 = vmax.xlane.f32.xlu0 %v277
    %v287 = vpop.xlane.xlu0 %286
    %288 = vmax.xlane.f32.xlu0 %v278
    %v289 = vpop.xlane.xlu0 %288
    %290 = vmax.xlane.f32.xlu0 %v279
    %v291 = vpop.xlane.xlu0 %290
    %292 = vmax.xlane.f32.xlu0 %v280
    %v293 = vpop.xlane.xlu0 %292
    %294 = vmax.xlane.f32.xlu0 %v281
    %v295 = vpop.xlane.xlu0 %294
    %296 = vmax.xlane.f32.xlu0 %v282
    %v297 = vpop.xlane.xlu0 %296
    %298 = vmax.xlane.f32.xlu0 %v283
    %v299 = vpop.xlane.xlu0 %298
    %vm300 = vcmp.eq.f32.partialorder %v276, %v285
    %vm301 = vcmp.eq.f32.partialorder %v277, %v287
    %vm302 = vcmp.eq.f32.partialorder %v278, %v289
    %vm303 = vcmp.eq.f32.partialorder %v279, %v291
    %vm304 = vcmp.eq.f32.partialorder %v280, %v293
    %vm305 = vcmp.eq.f32.partialorder %v281, %v295
    %vm306 = vcmp.eq.f32.partialorder %v282, %v297
    %vm307 = vcmp.eq.f32.partialorder %v283, %v299
    %v308 = vsel %vm300, %v25, %v268
    %v309 = vsel %vm301, %v26, %v269
    %v310 = vsel %vm302, %v27, %v270
    %v311 = vsel %vm303, %v28, %v271
    %v312 = vsel %vm304, %v29, %v272
    %v313 = vsel %vm305, %v30, %v273
    %v314 = vsel %vm306, %v31, %v274
    %v315 = vsel %vm307, %v32, %v275
    %316 = vst [vmem:[#allocation5] sm:$0xff] %v308
    %317 = vst [vmem:[#allocation5 + $0x8] sm:$0xff] %v309
    %318 = vst [vmem:[#allocation5 + $0x10] sm:$0xff] %v310
    %319 = vst [vmem:[#allocation5 + $0x18] sm:$0xff] %v311
    %320 = vst [vmem:[#allocation5 + $0x20] sm:$0xff] %v312
    %321 = vst [vmem:[#allocation5 + $0x28] sm:$0xff] %v313
    %322 = vst [vmem:[#allocation5 + $0x30] sm:$0xff] %v314
    %323 = vst [vmem:[#allocation5 + $0x38] sm:$0xff] %v315
    // Predicated region
    $region10: #{tpu_custom_call.1} parent=1 // pred_check
      _
    $region11: #{tpu_custom_call.1} parent=1 // pred_check_branch
      %325 = sbr.rel (0) target = $region13
    $region12: #{tpu_custom_call.1} parent=1 // pred_region
      %327 = vsyncadd [#allocation4], 0
      %s328 = sshll.u32 [#allocation5], 4
      %s329 = int_to_ptr.vmem [resolvable:$true] %s328
      %s330 = sshll.u32 %s1, 4
      %s331 = int_to_ptr.hbm [resolvable:$true] %s330
      %336 = dma.vmem_to_hbm [thread:$0]  %s329, 1024, %s331, [#allocation4], 128, 128, 8
    $region13: #{tpu_custom_call.1} parent=1 // pred_fallthru
      _
    // Predicated region
    $region14: #{tpu_custom_call.1} parent=1 // pred_check
      _
    $region15: #{tpu_custom_call.1} parent=1 // pred_check_branch
      %338 = sbr.rel (0) target = $region17
    $region16: #{tpu_custom_call.1} parent=1 // pred_region
      %340 = dma.done [#allocation4], 1024
    $region17: #{tpu_custom_call.1} parent=1 // pred_fallthru
      _
    %341 = vsyncpa [#allocation3], 1
    %342 = vsyncpa [#allocation4], 1

</llo_original>
